<compile_context>
chip_gen: v5e
topology: v5e:2x2
jax: 0.10.0
libtpu: 0.0.40
codegen_flags: <defaults>
</compile_context>

<pallas_src>
import numpy as np
import jax
import jax.numpy as jnp
from jax.experimental import pallas as pl
from jax.experimental.pallas import tpu as pltpu


def expand_kernel(x_ref, p_ref, o_ref):
    # x_ref: (s, s, h, w)        -- x.reshape(b,s,s,c',h,w)[bi, :, :, ci]
    # p_ref: (s, s, w, s*s*w)    -- constant one-hot scatter matrices
    # o_ref: (h, s*s*w)          -- out[bi, ci] with trailing (i, w, j) flattened
    s = x_ref.shape[0]
    acc = jnp.zeros(o_ref.shape, jnp.float32)
    for i in range(s):                       # s is static (gain)
        for j in range(s):
            v = x_ref[i, j].astype(jnp.float32)   # (h, w), lane-dense load
            p = p_ref[i, j]                        # (w, s*s*w) 0/1 scatter
            # Exact 3-way bf16 split: h1 + h2 + h3 == v bit-exactly, and each
            # piece is representable in bf16, so the one-hot matmul below is
            # exact under any MXU f32 emulation mode.
            h1 = v.astype(jnp.bfloat16).astype(jnp.float32)
            r = v - h1
            h2 = r.astype(jnp.bfloat16).astype(jnp.float32)
            h3 = r - h2
            acc = acc + jnp.dot(h1, p, preferred_element_type=jnp.float32)
            acc = acc + jnp.dot(h2, p, preferred_element_type=jnp.float32)
            acc = acc + jnp.dot(h3, p, preferred_element_type=jnp.float32)
    o_ref[...] = acc.astype(o_ref.dtype)     # single dense, lane-wide store


def _scatter_matrices(s, w):
    """P[i, j, w_idx, i*w*s + w_idx*s + j] = 1 ; everything else 0."""
    m = s * s * w
    p = np.zeros((s, s, w, m), np.float32)
    cols = np.arange(w)
    for i in range(s):
        for j in range(s):
            p[i, j, cols, i * w * s + cols * s + j] = 1.0
    return jnp.asarray(p)


def expand_pallas(x, gain=2):
    """x: (b, c, h, w); returns (b, c // gain**2, h*gain, w*gain)."""
    b, c, h, w = x.shape
    s = int(gain)
    assert c % (s * s) == 0, "channels must be divisible by gain**2"
    cout = c // (s * s)
    m = s * s * w

    x6 = x.reshape(b, s, s, cout, h, w)          # free (contiguous) reshape
    p = _scatter_matrices(s, w)                  # tiny constant, grid-invariant

    out = pl.pallas_call(
        expand_kernel,
        out_shape=jax.ShapeDtypeStruct((b, cout, h, m), x.dtype),
        grid=(b, cout),
        in_specs=[
            # whole (s, s, h, w) slab for one (batch, c_out) pair
            pl.BlockSpec((None, s, s, None, h, w),
                         lambda bi, ci: (bi, 0, 0, ci, 0, 0)),
            # constant scatter matrices, same block every step
            pl.BlockSpec((s, s, w, m), lambda bi, ci: (0, 0, 0, 0)),
        ],
        out_specs=pl.BlockSpec((None, None, h, m),
                               lambda bi, ci: (bi, ci, 0, 0)),
        compiler_params=pltpu.CompilerParams(
            dimension_semantics=("parallel", "parallel")),
    )(x6, p)

    return out.reshape(b, cout, h * s, w * s)    # free (contiguous) reshape


def expand_reference(x, gain=2):
    """Pure-JAX reference mirroring the PyTorch module exactly."""
    b, c, h, w = x.shape
    s = gain
    cout = c // (s * s)
    y = x.reshape(b, s, s, cout, h, w)
    y = jnp.transpose(y, (0, 3, 4, 1, 5, 2))
    return y.reshape(b, cout, h * s, w * s)


if __name__ == "__main__":
    key = jax.random.PRNGKey(0)
    x = jax.random.normal(key, (2, 4, 16, 16), jnp.float32)   # b=2, c=4, 16x16

    out = expand_pallas(x, gain=2)
    out = jax.block_until_ready(out)

    ref = expand_reference(x, gain=2)
    assert out.shape == (2, 1, 32, 32), out.shape
    assert jnp.allclose(out, ref, atol=1e-6, rtol=1e-6), "mismatch vs reference"
    print("KERNEL_OK")
</pallas_src>

<mosaic_0001>
module attributes {stable_mosaic.version = 11 : i64} {
  func.func @expand_kernel(%arg0: i32, %arg1: i32, %arg2: memref<1x2x2x1x16x16xf32, #tpu.memory_space<vmem>>, %arg3: memref<2x2x16x64xf32, #tpu.memory_space<vmem>>, %arg4: memref<1x1x16x64xf32, #tpu.memory_space<vmem>>) attributes {dimension_semantics = [#tpu.dimension_semantics<parallel>, #tpu.dimension_semantics<parallel>], iteration_bounds = array<i64: 2, 1>, scalar_prefetch = 0 : i64, scratch_operands = 0 : i64, tpu.core_type = #tpu.core_type<tc>, window_params = [{transform_indices = @transform_0, window_bounds = array<i64: 1, 2, 2, 1, 16, 16>}, {pipeline_mode = #tpu.pipeline_mode<synchronous>, transform_indices = @transform_1, window_bounds = array<i64: 2, 2, 16, 64>}, {transform_indices = @transform_2, window_bounds = array<i64: 1, 1, 16, 64>}]} {
    %cst = arith.constant 0.000000e+00 : f32
    %0 = vector.broadcast %cst : f32 to vector<16x64xf32>
    %c0 = arith.constant 0 : index
    %c0_0 = arith.constant 0 : index
    %c0_1 = arith.constant 0 : index
    %c0_2 = arith.constant 0 : index
    %c0_3 = arith.constant 0 : index
    %c0_4 = arith.constant 0 : index
    %1 = vector.load %arg2[%c0, %c0_0, %c0_1, %c0_2, %c0_3, %c0_4] : memref<1x2x2x1x16x16xf32, #tpu.memory_space<vmem>>, vector<1x1x1x1x16x16xf32>
    %2 = vector.shape_cast %1 : vector<1x1x1x1x16x16xf32> to vector<16x16xf32>
    %c0_5 = arith.constant 0 : index
    %c0_6 = arith.constant 0 : index
    %c0_7 = arith.constant 0 : index
    %c0_8 = arith.constant 0 : index
    %3 = vector.load %arg3[%c0_5, %c0_6, %c0_7, %c0_8] : memref<2x2x16x64xf32, #tpu.memory_space<vmem>>, vector<1x1x16x64xf32>
    %4 = vector.shape_cast %3 : vector<1x1x16x64xf32> to vector<16x64xf32>
    %5 = arith.truncf %2 : vector<16x16xf32> to vector<16x16xbf16>
    %6 = arith.extf %5 : vector<16x16xbf16> to vector<16x16xf32>
    %7 = arith.subf %2, %6 : vector<16x16xf32>
    %8 = arith.truncf %7 : vector<16x16xf32> to vector<16x16xbf16>
    %9 = arith.extf %8 : vector<16x16xbf16> to vector<16x16xf32>
    %10 = arith.subf %7, %9 : vector<16x16xf32>
    %cst_9 = arith.constant dense<0.000000e+00> : vector<16x64xf32>
    %11 = tpu.matmul %6, %4, %cst_9 {dimension_numbers = #tpu.dot_dimension_numbers<[1], [0], [0], [1], [0, 0, 1, 1], [], []>} : vector<16x16xf32>, vector<16x64xf32>, vector<16x64xf32> -> vector<16x64xf32>
    %12 = arith.addf %0, %11 : vector<16x64xf32>
    %cst_10 = arith.constant dense<0.000000e+00> : vector<16x64xf32>
    %13 = tpu.matmul %9, %4, %cst_10 {dimension_numbers = #tpu.dot_dimension_numbers<[1], [0], [0], [1], [0, 0, 1, 1], [], []>} : vector<16x16xf32>, vector<16x64xf32>, vector<16x64xf32> -> vector<16x64xf32>
    %14 = arith.addf %12, %13 : vector<16x64xf32>
    %cst_11 = arith.constant dense<0.000000e+00> : vector<16x64xf32>
    %15 = tpu.matmul %10, %4, %cst_11 {dimension_numbers = #tpu.dot_dimension_numbers<[1], [0], [0], [1], [0, 0, 1, 1], [], []>} : vector<16x16xf32>, vector<16x64xf32>, vector<16x64xf32> -> vector<16x64xf32>
    %16 = arith.addf %14, %15 : vector<16x64xf32>
    %c0_12 = arith.constant 0 : index
    %c0_13 = arith.constant 0 : index
    %c1 = arith.constant 1 : index
    %c0_14 = arith.constant 0 : index
    %c0_15 = arith.constant 0 : index
    %c0_16 = arith.constant 0 : index
    %17 = vector.load %arg2[%c0_12, %c0_13, %c1, %c0_14, %c0_15, %c0_16] : memref<1x2x2x1x16x16xf32, #tpu.memory_space<vmem>>, vector<1x1x1x1x16x16xf32>
    %18 = vector.shape_cast %17 : vector<1x1x1x1x16x16xf32> to vector<16x16xf32>
    %c0_17 = arith.constant 0 : index
    %c1_18 = arith.constant 1 : index
    %c0_19 = arith.constant 0 : index
    %c0_20 = arith.constant 0 : index
    %19 = vector.load %arg3[%c0_17, %c1_18, %c0_19, %c0_20] : memref<2x2x16x64xf32, #tpu.memory_space<vmem>>, vector<1x1x16x64xf32>
    %20 = vector.shape_cast %19 : vector<1x1x16x64xf32> to vector<16x64xf32>
    %21 = arith.truncf %18 : vector<16x16xf32> to vector<16x16xbf16>
    %22 = arith.extf %21 : vector<16x16xbf16> to vector<16x16xf32>
    %23 = arith.subf %18, %22 : vector<16x16xf32>
    %24 = arith.truncf %23 : vector<16x16xf32> to vector<16x16xbf16>
    %25 = arith.extf %24 : vector<16x16xbf16> to vector<16x16xf32>
    %26 = arith.subf %23, %25 : vector<16x16xf32>
    %cst_21 = arith.constant dense<0.000000e+00> : vector<16x64xf32>
    %27 = tpu.matmul %22, %20, %cst_21 {dimension_numbers = #tpu.dot_dimension_numbers<[1], [0], [0], [1], [0, 0, 1, 1], [], []>} : vector<16x16xf32>, vector<16x64xf32>, vector<16x64xf32> -> vector<16x64xf32>
    %28 = arith.addf %16, %27 : vector<16x64xf32>
    %cst_22 = arith.constant dense<0.000000e+00> : vector<16x64xf32>
    %29 = tpu.matmul %25, %20, %cst_22 {dimension_numbers = #tpu.dot_dimension_numbers<[1], [0], [0], [1], [0, 0, 1, 1], [], []>} : vector<16x16xf32>, vector<16x64xf32>, vector<16x64xf32> -> vector<16x64xf32>
    %30 = arith.addf %28, %29 : vector<16x64xf32>
    %cst_23 = arith.constant dense<0.000000e+00> : vector<16x64xf32>
    %31 = tpu.matmul %26, %20, %cst_23 {dimension_numbers = #tpu.dot_dimension_numbers<[1], [0], [0], [1], [0, 0, 1, 1], [], []>} : vector<16x16xf32>, vector<16x64xf32>, vector<16x64xf32> -> vector<16x64xf32>
    %32 = arith.addf %30, %31 : vector<16x64xf32>
    %c0_24 = arith.constant 0 : index
    %c1_25 = arith.constant 1 : index
    %c0_26 = arith.constant 0 : index
    %c0_27 = arith.constant 0 : index
    %c0_28 = arith.constant 0 : index
    %c0_29 = arith.constant 0 : index
    %33 = vector.load %arg2[%c0_24, %c1_25, %c0_26, %c0_27, %c0_28, %c0_29] : memref<1x2x2x1x16x16xf32, #tpu.memory_space<vmem>>, vector<1x1x1x1x16x16xf32>
    %34 = vector.shape_cast %33 : vector<1x1x1x1x16x16xf32> to vector<16x16xf32>
    %c1_30 = arith.constant 1 : index
    %c0_31 = arith.constant 0 : index
    %c0_32 = arith.constant 0 : index
    %c0_33 = arith.constant 0 : index
    %35 = vector.load %arg3[%c1_30, %c0_31, %c0_32, %c0_33] : memref<2x2x16x64xf32, #tpu.memory_space<vmem>>, vector<1x1x16x64xf32>
    %36 = vector.shape_cast %35 : vector<1x1x16x64xf32> to vector<16x64xf32>
    %37 = arith.truncf %34 : vector<16x16xf32> to vector<16x16xbf16>
    %38 = arith.extf %37 : vector<16x16xbf16> to vector<16x16xf32>
    %39 = arith.subf %34, %38 : vector<16x16xf32>
    %40 = arith.truncf %39 : vector<16x16xf32> to vector<16x16xbf16>
    %41 = arith.extf %40 : vector<16x16xbf16> to vector<16x16xf32>
    %42 = arith.subf %39, %41 : vector<16x16xf32>
    %cst_34 = arith.constant dense<0.000000e+00> : vector<16x64xf32>
    %43 = tpu.matmul %38, %36, %cst_34 {dimension_numbers = #tpu.dot_dimension_numbers<[1], [0], [0], [1], [0, 0, 1, 1], [], []>} : vector<16x16xf32>, vector<16x64xf32>, vector<16x64xf32> -> vector<16x64xf32>
    %44 = arith.addf %32, %43 : vector<16x64xf32>
    %cst_35 = arith.constant dense<0.000000e+00> : vector<16x64xf32>
    %45 = tpu.matmul %41, %36, %cst_35 {dimension_numbers = #tpu.dot_dimension_numbers<[1], [0], [0], [1], [0, 0, 1, 1], [], []>} : vector<16x16xf32>, vector<16x64xf32>, vector<16x64xf32> -> vector<16x64xf32>
    %46 = arith.addf %44, %45 : vector<16x64xf32>
    %cst_36 = arith.constant dense<0.000000e+00> : vector<16x64xf32>
    %47 = tpu.matmul %42, %36, %cst_36 {dimension_numbers = #tpu.dot_dimension_numbers<[1], [0], [0], [1], [0, 0, 1, 1], [], []>} : vector<16x16xf32>, vector<16x64xf32>, vector<16x64xf32> -> vector<16x64xf32>
    %48 = arith.addf %46, %47 : vector<16x64xf32>
    %c0_37 = arith.constant 0 : index
    %c1_38 = arith.constant 1 : index
    %c1_39 = arith.constant 1 : index
    %c0_40 = arith.constant 0 : index
    %c0_41 = arith.constant 0 : index
    %c0_42 = arith.constant 0 : index
    %49 = vector.load %arg2[%c0_37, %c1_38, %c1_39, %c0_40, %c0_41, %c0_42] : memref<1x2x2x1x16x16xf32, #tpu.memory_space<vmem>>, vector<1x1x1x1x16x16xf32>
    %50 = vector.shape_cast %49 : vector<1x1x1x1x16x16xf32> to vector<16x16xf32>
    %c1_43 = arith.constant 1 : index
    %c1_44 = arith.constant 1 : index
    %c0_45 = arith.constant 0 : index
    %c0_46 = arith.constant 0 : index
    %51 = vector.load %arg3[%c1_43, %c1_44, %c0_45, %c0_46] : memref<2x2x16x64xf32, #tpu.memory_space<vmem>>, vector<1x1x16x64xf32>
    %52 = vector.shape_cast %51 : vector<1x1x16x64xf32> to vector<16x64xf32>
    %53 = arith.truncf %50 : vector<16x16xf32> to vector<16x16xbf16>
    %54 = arith.extf %53 : vector<16x16xbf16> to vector<16x16xf32>
    %55 = arith.subf %50, %54 : vector<16x16xf32>
    %56 = arith.truncf %55 : vector<16x16xf32> to vector<16x16xbf16>
    %57 = arith.extf %56 : vector<16x16xbf16> to vector<16x16xf32>
    %58 = arith.subf %55, %57 : vector<16x16xf32>
    %cst_47 = arith.constant dense<0.000000e+00> : vector<16x64xf32>
    %59 = tpu.matmul %54, %52, %cst_47 {dimension_numbers = #tpu.dot_dimension_numbers<[1], [0], [0], [1], [0, 0, 1, 1], [], []>} : vector<16x16xf32>, vector<16x64xf32>, vector<16x64xf32> -> vector<16x64xf32>
    %60 = arith.addf %48, %59 : vector<16x64xf32>
    %cst_48 = arith.constant dense<0.000000e+00> : vector<16x64xf32>
    %61 = tpu.matmul %57, %52, %cst_48 {dimension_numbers = #tpu.dot_dimension_numbers<[1], [0], [0], [1], [0, 0, 1, 1], [], []>} : vector<16x16xf32>, vector<16x64xf32>, vector<16x64xf32> -> vector<16x64xf32>
    %62 = arith.addf %60, %61 : vector<16x64xf32>
    %cst_49 = arith.constant dense<0.000000e+00> : vector<16x64xf32>
    %63 = tpu.matmul %58, %52, %cst_49 {dimension_numbers = #tpu.dot_dimension_numbers<[1], [0], [0], [1], [0, 0, 1, 1], [], []>} : vector<16x16xf32>, vector<16x64xf32>, vector<16x64xf32> -> vector<16x64xf32>
    %64 = arith.addf %62, %63 : vector<16x64xf32>
    %c0_50 = arith.constant 0 : index
    %c0_51 = arith.constant 0 : index
    %c0_52 = arith.constant 0 : index
    %c0_53 = arith.constant 0 : index
    %65 = vector.load %arg4[%c0_50, %c0_51, %c0_52, %c0_53] : memref<1x1x16x64xf32, #tpu.memory_space<vmem>>, vector<1x1x16x64xf32>
    %66 = vector.shape_cast %65 : vector<1x1x16x64xf32> to vector<16x64xf32>
    %67 = vector.shape_cast %64 : vector<16x64xf32> to vector<1x1x16x64xf32>
    tpu.vector_store %arg4[%c0_50, %c0_51, %c0_52, %c0_53], %67 {strides = array<i32>} : memref<1x1x16x64xf32, #tpu.memory_space<vmem>>, vector<1x1x16x64xf32>,
    return
  }
  func.func @transform_0(%arg0: i32, %arg1: i32) -> (i32, i32, i32, i32, i32, i32) {
    %c0_i32 = arith.constant 0 : i32
    %c0_i32_0 = arith.constant 0 : i32
    %c0_i32_1 = arith.constant 0 : i32
    %c0_i32_2 = arith.constant 0 : i32
    %c0_i32_3 = arith.constant 0 : i32
    return %arg0, %c0_i32, %c0_i32_0, %arg1, %c0_i32_1, %c0_i32_2 : i32, i32, i32, i32, i32, i32
  }
  func.func @transform_1(%arg0: i32, %arg1: i32) -> (i32, i32, i32, i32) {
    %c0_i32 = arith.constant 0 : i32
    %c0_i32_0 = arith.constant 0 : i32
    %c0_i32_1 = arith.constant 0 : i32
    %c0_i32_2 = arith.constant 0 : i32
    %c0_i32_3 = arith.constant 0 : i32
    return %c0_i32, %c0_i32_0, %c0_i32_1, %c0_i32_2 : i32, i32, i32, i32
  }
  func.func @transform_2(%arg0: i32, %arg1: i32) -> (i32, i32, i32, i32) {
    %c0_i32 = arith.constant 0 : i32
    %c0_i32_0 = arith.constant 0 : i32
    %c0_i32_1 = arith.constant 0 : i32
    return %arg0, %arg1, %c0_i32, %c0_i32_0 : i32, i32, i32, i32
  }
}

</mosaic_0001>

<llo_original>
// kernel: tpu_custom_call.1
$region0: #{tpu_custom_call.1}
  #allocation0 [shape = 'u32[]', space=smem, size = 0x4, offset = 0x4, fixed_abs, tag = 'smem constant byte address 0x4 - core index']
  #allocation1 [shape = 'u32[72,128]{1,0:T(1,128)}', space=vmem, size = 0x9000, scoped, tag = 'internal scratch']
  %s0 = inlined_call_operand.hbm [shape: f32[2,2,2,1,16,16], index: 0, kind: input, shape index: {}]
  %s1 = inlined_call_operand.hbm [shape: f32[2,2,16,64], index: 1, kind: input, shape index: {}]
  %s2 = inlined_call_operand.hbm [shape: f32[2,1,16,64], index: 2, kind: output, shape index: {}]
  %s3 = sld [smem:[#allocation0]]
  $region49: #{tpu_custom_call.1} parent=0
    _
  %s5 = ssub.s32 1, %s3
  %s6 = scalar_select 0, %s5, %s3
  $region1: #{tpu_custom_call.1} parent=0
    #allocation2 [shape = 'u8[65536]{0}', space=vmem, size = 0x10000, scoped, tag = 'input window, operand 0']
    #allocation3 [shape = 's32[2]{0}', space=sflag, size = 0x8, scoped, tag = 'scoped memory for tpu_custom_call.1']
    #allocation4 [shape = 's32[2]{0}', space=sflag, size = 0x8, scoped, tag = 'scoped memory for tpu_custom_call.1']
    #allocation5 [shape = 'u8[32768]{0}', space=vmem, size = 0x8000, scoped, tag = 'input window, operand 1, single buffered']
    #allocation6 [shape = 's32[1]{0}', space=sflag, size = 0x4, scoped, tag = 'scoped memory for tpu_custom_call.1']
    #allocation7 [shape = 'u8[16384]{0}', space=vmem, size = 0x4000, scoped, tag = 'output window, operand 0']
    %7 = vsyncpa [#allocation3], 0
    %s8 = scalar_lea.sflag [#allocation3], 1
    %9 = vsyncpa %s8, 0
    %10 = vsyncpa [#allocation6], 0
    %11 = vsyncpa [#allocation4], 0
    %s12 = scalar_lea.sflag [#allocation4], 1
    %13 = vsyncpa %s12, 0
    loop: start=0, step=1, limit=4
    $region2: #{tpu_custom_call.1} parent=1 // loop_pre_header
      _
    $region3: #{tpu_custom_call.1} parent=1 // loop_header
      %s15 = sphi 0, %s19
      %p16 = scmp.ge.s32.totalorder %s15, 4
      %s22 = sphi 0, %s34
      %s23 = sphi 0, %s30
      %s24 = sphi 0, %s22
      %s25 = sphi 0, %s23
      %s26 = sphi 0, %s24
      %s27 = sphi 0, %s25
      %s39 = sphi 0, %s41
      %s42 = sphi 0, %s39
      %s43 = sphi 0, %s42
      %s59 = sphi 0, %s43
      %s63 = sphi 0, %s63
      %s65 = sphi 0, %s63
      %s66 = sphi 0, %s65
      %s80 = sphi 0, %s66
      %s88 = sphi 0, %s90
      %s91 = sphi 0, %s88
      %s92 = sphi 0, %s91
      %s108 = sphi 0, %s92
    $region4: #{tpu_custom_call.1} parent=1 // loop_header_branch
      %18 = sbr.rel (%p16) target = $region8
    $region5: #{tpu_custom_call.1} parent=1 // loop_body
      %s20 = ssub.s32 %s15, 1
      %s21 = ssub.s32 %s15, 2
      %s28 = sadd.s32 1, %s23
      %p29 = scmp.ge.s32.totalorder %s28, 1
      %s30 = scalar_select %p29, 0, %s28
      %s31 = sadd.s32 1, %s22
      %s32 = scalar_select %p29, %s31, %s22
      %p33 = scmp.ge.s32.totalorder %s32, 2
      %s34 = scalar_select %p33, 0, %s32
      %s35 = ssub.s32 %s22, %s34
      %s36 = ssub.s32 %s23, %s30
      %s37 = sor.u32 %s35, %s36
      %p38 = scmp.eq.s32.totalorder %s37, 0
      %s40 = sadd.s32 %s39, 1
      %s41 = scalar_select %p38, %s39, %s40
      %p44 = pneg %p38
      %p45 = scmp.eq.s32.totalorder %s15, 1
      %p46 = por %p44, %p45
      %p47 = scmp.ne.s32.totalorder %s39, %s42
      %p48 = scmp.eq.s32.totalorder %s15, 0
      %p49 = por %p47, %p48
      %p50 = scmp.ne.s32.totalorder %s39, %s42
      %p51 = scmp.eq.s32.totalorder %s20, 1
      %p52 = por %p50, %p51
      %p53 = scmp.ne.s32.totalorder %s42, %s43
      %p54 = scmp.eq.s32.totalorder %s20, 0
      %p55 = por %p53, %p54
      %p56 = scmp.ne.s32.totalorder %s42, %s43
      %p57 = scmp.eq.s32.totalorder %s21, 1
      %p58 = por %p56, %p57
      %p60 = scmp.ne.s32.totalorder %s43, %s59
      %p61 = scmp.eq.s32.totalorder %s21, 0
      %p62 = por %p60, %p61
      %s64 = sadd.s32 %s63, 1
      %p67 = scmp.eq.s32.totalorder %s15, 1
      %p68 = scmp.ne.s32.totalorder %s63, %s65
      %p69 = scmp.eq.s32.totalorder %s15, 0
      %p70 = por %p68, %p69
      %p71 = scmp.ne.s32.totalorder %s63, %s65
      %p72 = scmp.eq.s32.totalorder %s20, 1
      %p73 = por %p71, %p72
      %p74 = scmp.ne.s32.totalorder %s65, %s66
      %p75 = scmp.eq.s32.totalorder %s20, 0
      %p76 = por %p74, %p75
      %p77 = scmp.ne.s32.totalorder %s65, %s66
      %p78 = scmp.eq.s32.totalorder %s21, 1
      %p79 = por %p77, %p78
      %p81 = scmp.ne.s32.totalorder %s66, %s80
      %p82 = scmp.eq.s32.totalorder %s21, 0
      %p83 = por %p81, %p82
      %s84 = ssub.s32 %s22, %s34
      %s85 = ssub.s32 %s23, %s30
      %s86 = sor.u32 %s84, %s85
      %p87 = scmp.eq.s32.totalorder %s86, 0
      %s89 = sadd.s32 %s88, 1
      %s90 = scalar_select %p87, %s88, %s89
      %p93 = pneg %p87
      %p94 = scmp.eq.s32.totalorder %s15, 1
      %p95 = por %p93, %p94
      %p96 = scmp.ne.s32.totalorder %s88, %s91
      %p97 = scmp.eq.s32.totalorder %s15, 0
      %p98 = por %p96, %p97
      %p99 = scmp.ne.s32.totalorder %s88, %s91
      %p100 = scmp.eq.s32.totalorder %s20, 1
      %p101 = por %p99, %p100
      %p102 = scmp.ne.s32.totalorder %s91, %s92
      %p103 = scmp.eq.s32.totalorder %s20, 0
      %p104 = por %p102, %p103
      %p105 = scmp.ne.s32.totalorder %s91, %s92
      %p106 = scmp.eq.s32.totalorder %s21, 1
      %p107 = por %p105, %p106
      %p109 = scmp.ne.s32.totalorder %s92, %s108
      %p110 = scmp.eq.s32.totalorder %s21, 0
      %p111 = por %p109, %p110
      %p112 = scmp.le.s32.totalorder 1, %s15
      %p113 = scmp.lt.s32.totalorder %s15, 3
      %p114 = pnand %p112, %p113
      %p115 = pneg %p114
      // Predicated region
      $region9: #{tpu_custom_call.1} parent=5 // pred_check
        _
      $region10: #{tpu_custom_call.1} parent=5 // pred_check_branch
        %117 = sbr.rel (%p114) target = $region12
      $region11: #{tpu_custom_call.1} parent=5 // pred_region
        %s118 = ssub.s32 %s15, 1
        // Predicated region
        $region13: #{tpu_custom_call.1} parent=11 // pred_check
          %p119 = pneg %p76
        $region14: #{tpu_custom_call.1} parent=11 // pred_check_branch
          %121 = sbr.rel (%p119) target = $region16
        $region15: #{tpu_custom_call.1} parent=11 // pred_region
          %123 = vsyncadd [#allocation6], 0
          %s124 = sshll.u32 %s1, 4
          %s125 = int_to_ptr.hbm [resolvable:$true] %s124
          %s126 = sshll.u32 [#allocation5], 4
          %s127 = int_to_ptr.vmem [resolvable:$true] %s126
          %132 = dma.hbm_to_vmem [thread:$0]  %s125, 1024, %s127, [#allocation6], 128, 128, 8
        $region16: #{tpu_custom_call.1} parent=11 // pred_fallthru
          _
      $region12: #{tpu_custom_call.1} parent=5 // pred_fallthru
        _
      %p133 = scmp.lt.s32.totalorder %s15, 2
      // Predicated region
      $region17: #{tpu_custom_call.1} parent=5 // pred_check
        %p134 = pneg %p133
      $region18: #{tpu_custom_call.1} parent=5 // pred_check_branch
        %136 = sbr.rel (%p134) target = $region20
      $region19: #{tpu_custom_call.1} parent=5 // pred_region
        // Predicated region
        $region21: #{tpu_custom_call.1} parent=19 // pred_check
          %p137 = pneg %p49
        $region22: #{tpu_custom_call.1} parent=19 // pred_check_branch
          %139 = sbr.rel (%p137) target = $region24
        $region23: #{tpu_custom_call.1} parent=19 // pred_region
          %s140 = sand.u32 %s39, 1
          %s141 = scalar_lea.sflag [#allocation3], %s140
          %s142 = sand.u32 %s39, 1
          %s143 = smul.addr %s142, 64
          %s144 = scalar_lea.vmem [#allocation2], %s143
          %146 = vsyncadd %s141, 0
          %s147 = smul.addr %s23, 2
          %s148 = smul.addr %s22, 8
          %s149 = sadd.s32 %s147, %s148
          %s150 = smul.addr %s149, 8
          %s151 = scalar_lea.hbm %s0, %s150
          %s152 = sshll.u32 %s151, 4
          %s153 = int_to_ptr.hbm [resolvable:$true] %s152
          %s154 = sshll.u32 %s144, 4
          %s155 = int_to_ptr.vmem [resolvable:$true] %s154
          %160 = dma.hbm_to_vmem [thread:$0]  %s153, 1024, %s155, %s141, 128, 128, 8
        $region24: #{tpu_custom_call.1} parent=19 // pred_fallthru
          _
      $region20: #{tpu_custom_call.1} parent=5 // pred_fallthru
        _
      %p161 = scmp.le.s32.totalorder 1, %s15
      %p162 = scmp.lt.s32.totalorder %s15, 3
      %p163 = pnand %p161, %p162
      %p164 = pneg %p163
      // Predicated region
      $region25: #{tpu_custom_call.1} parent=5 // pred_check
        _
      $region26: #{tpu_custom_call.1} parent=5 // pred_check_branch
        %166 = sbr.rel (%p163) target = $region28
      $region27: #{tpu_custom_call.1} parent=5 // pred_region
        %s167 = ssub.s32 %s15, 1
        %s168 = sand.u32 %s42, 1
        %s169 = scalar_lea.sflag [#allocation3], %s168
        %s170 = sand.u32 %s42, 1
        %s171 = smul.addr %s170, 64
        %s172 = scalar_lea.vmem [#allocation2], %s171
        // Predicated region
        $region29: #{tpu_custom_call.1} parent=27 // pred_check
          %p173 = pneg %p55
        $region30: #{tpu_custom_call.1} parent=27 // pred_check_branch
          %175 = sbr.rel (%p173) target = $region32
        $region31: #{tpu_custom_call.1} parent=27 // pred_region
          %177 = dma.done %s169, 1024
        $region32: #{tpu_custom_call.1} parent=27 // pred_fallthru
          _
        // Predicated region
        $region33: #{tpu_custom_call.1} parent=27 // pred_check
          %p178 = pneg %p76
        $region34: #{tpu_custom_call.1} parent=27 // pred_check_branch
          %180 = sbr.rel (%p178) target = $region36
        $region35: #{tpu_custom_call.1} parent=27 // pred_region
          %182 = dma.done [#allocation6], 1024
        $region36: #{tpu_custom_call.1} parent=27 // pred_fallthru
          _
        %s183 = sand.u32 %s42, 1
        %s184 = scalar_lea.sflag [#allocation3], %s183
        %s185 = sand.u32 %s42, 1
        %s186 = smul.addr %s185, 64
        %s187 = scalar_lea.vmem [#allocation2], %s186
        %p188 = pneg %p55
        %p189 = pneg %p52
        %p190 = pneg %p76
        %p191 = pneg %p73
        %p192 = pneg %p104
        %p193 = pneg %p101
        %s194 = sand.u32 %s91, 1
        %s195 = scalar_lea.sflag [#allocation4], %s194
        %s196 = sand.u32 %s91, 1
        %s197 = smul.addr %s196, 16
        %s198 = scalar_lea.vmem [#allocation7], %s197
        %v199 = vld [vmem:[%s172] sm:$0xff]
        %v200 = vld [vmem:[%s172 + $0x8] sm:$0xff]
        %v201 = vld [vmem:[#allocation5] sm:$0xff]
        %v202 = vld [vmem:[#allocation5 + $0x8] sm:$0xff]
        %v203 = vpack.c.bf16 %v199, %v199
        %v204 = vpack.c.bf16 %v200, %v200
        %v205 = vunpack.c.l.bf16 %v203
        %v206 = vunpack.c.l.bf16 %v204
        %v207 = vsub.f32 %v199, %v205
        %v208 = vsub.f32 %v200, %v206
        %v209 = vpack.c.bf16 %v207, %v207
        %v210 = vpack.c.bf16 %v208, %v208
        %v211 = vunpack.c.l.bf16 %v209
        %v212 = vunpack.c.l.bf16 %v210
        %v213 = vsub.f32 %v207, %v211
        %v214 = vsub.f32 %v208, %v212
        %vm215 = vcmask 130048
        %v217 = vsel %vm215, %v211, 0
        %v220 = vsel %vm215, %v212, 0
        %222 = vmatpush.msra.mxu0 0.0
        %223 = vmatpush.msra.mxu0 0.0
        %224 = vmatpush.msra.mxu0 0.0
        %225 = vmatpush.msra.mxu0 0.0
        %226 = vmatpush.msra.mxu0 0.0
        %227 = vmatpush.msra.mxu0 0.0
        %228 = vmatpush.msra.mxu0 0.0
        %229 = vmatpush.msra.mxu0 0.0
        %230 = vmatpush.msra.mxu0 0.0
        %231 = vmatpush.msra.mxu0 0.0
        %232 = vmatpush.msra.mxu0 0.0
        %233 = vmatpush.msra.mxu0 0.0
        %234 = vmatpush.msra.mxu0 0.0
        %235 = vmatpush.msra.mxu0 0.0
        %236 = vmatpush.msra.mxu0 %v202
        %237 = vmatpush.msra.mxu0 %v201
        %238 = vmatmul.f32.gmra.mxu0 %v217
        %v239 = vpop.f32.mrf.mxu0
        %v240 = vadd.f32 0.0, %v239
        %241 = vmatmul.f32.gmra.mxu0 %v220
        %v242 = vpop.f32.mrf.mxu0
        %v243 = vadd.f32 0.0, %v242
        %244 = vdwg.mxu0
        %v246 = vsel %vm215, %v205, 0
        %v249 = vsel %vm215, %v206, 0
        %251 = vmatpush.msra.mxu0 0.0
        %252 = vmatpush.msra.mxu0 0.0
        %253 = vmatpush.msra.mxu0 0.0
        %254 = vmatpush.msra.mxu0 0.0
        %255 = vmatpush.msra.mxu0 0.0
        %256 = vmatpush.msra.mxu0 0.0
        %257 = vmatpush.msra.mxu0 0.0
        %258 = vmatpush.msra.mxu0 0.0
        %259 = vmatpush.msra.mxu0 0.0
        %260 = vmatpush.msra.mxu0 0.0
        %261 = vmatpush.msra.mxu0 0.0
        %262 = vmatpush.msra.mxu0 0.0
        %263 = vmatpush.msra.mxu0 0.0
        %264 = vmatpush.msra.mxu0 0.0
        %265 = vmatpush.msra.mxu0 %v202
        %266 = vmatpush.msra.mxu0 %v201
        %267 = vmatmul.f32.gmra.mxu0 %v246
        %v268 = vpop.f32.mrf.mxu0
        %v269 = vadd.f32 %v240, %v268
        %270 = vmatmul.f32.gmra.mxu0 %v249
        %v271 = vpop.f32.mrf.mxu0
        %v272 = vadd.f32 %v243, %v271
        %273 = vdwg.mxu0
        %v275 = vsel %vm215, %v213, 0
        %v278 = vsel %vm215, %v214, 0
        %280 = vmatpush.msra.mxu0 0.0
        %281 = vmatpush.msra.mxu0 0.0
        %282 = vmatpush.msra.mxu0 0.0
        %283 = vmatpush.msra.mxu0 0.0
        %284 = vmatpush.msra.mxu0 0.0
        %285 = vmatpush.msra.mxu0 0.0
        %286 = vmatpush.msra.mxu0 0.0
        %287 = vmatpush.msra.mxu0 0.0
        %288 = vmatpush.msra.mxu0 0.0
        %289 = vmatpush.msra.mxu0 0.0
        %290 = vmatpush.msra.mxu0 0.0
        %291 = vmatpush.msra.mxu0 0.0
        %292 = vmatpush.msra.mxu0 0.0
        %293 = vmatpush.msra.mxu0 0.0
        %294 = vmatpush.msra.mxu0 %v202
        %295 = vmatpush.msra.mxu0 %v201
        %296 = vmatmul.f32.gmra.mxu0 %v275
        %v297 = vpop.f32.mrf.mxu0
        %v298 = vadd.f32 0.0, %v297
        %299 = vmatmul.f32.gmra.mxu0 %v278
        %v300 = vpop.f32.mrf.mxu0
        %v301 = vadd.f32 0.0, %v300
        %302 = vdwg.mxu0
        %v303 = vadd.f32 %v269, %v298
        %v304 = vadd.f32 %v272, %v301
        %s305 = scalar_lea.vmem %s172, 16 [#allocation2]
        %v306 = vld [vmem:[%s305] sm:$0xff]
        %v307 = vld [vmem:[%s305 + $0x8] sm:$0xff]
        %s308 = scalar_lea.vmem [#allocation5], 16
        %v309 = vld [vmem:[%s308] sm:$0xff]
        %v310 = vld [vmem:[%s308 + $0x8] sm:$0xff]
        %v311 = vpack.c.bf16 %v306, %v306
        %v312 = vpack.c.bf16 %v307, %v307
        %v313 = vunpack.c.l.bf16 %v311
        %v314 = vunpack.c.l.bf16 %v312
        %v315 = vsub.f32 %v306, %v313
        %v316 = vsub.f32 %v307, %v314
        %v317 = vpack.c.bf16 %v315, %v315
        %v318 = vpack.c.bf16 %v316, %v316
        %v319 = vunpack.c.l.bf16 %v317
        %v320 = vunpack.c.l.bf16 %v318
        %v321 = vsub.f32 %v315, %v319
        %v322 = vsub.f32 %v316, %v320
        %v324 = vsel %vm215, %v313, 0
        %v327 = vsel %vm215, %v314, 0
        %329 = vmatpush.msra.mxu0 0.0
        %330 = vmatpush.msra.mxu0 0.0
        %331 = vmatpush.msra.mxu0 0.0
        %332 = vmatpush.msra.mxu0 0.0
        %333 = vmatpush.msra.mxu0 0.0
        %334 = vmatpush.msra.mxu0 0.0
        %335 = vmatpush.msra.mxu0 0.0
        %336 = vmatpush.msra.mxu0 0.0
        %337 = vmatpush.msra.mxu0 0.0
        %338 = vmatpush.msra.mxu0 0.0
        %339 = vmatpush.msra.mxu0 0.0
        %340 = vmatpush.msra.mxu0 0.0
        %341 = vmatpush.msra.mxu0 0.0
        %342 = vmatpush.msra.mxu0 0.0
        %343 = vmatpush.msra.mxu0 %v310
        %344 = vmatpush.msra.mxu0 %v309
        %345 = vmatmul.f32.gmra.mxu0 %v324
        %v346 = vpop.f32.mrf.mxu0
        %v347 = vadd.f32 0.0, %v346
        %348 = vmatmul.f32.gmra.mxu0 %v327
        %v349 = vpop.f32.mrf.mxu0
        %v350 = vadd.f32 0.0, %v349
        %351 = vdwg.mxu0
        %v352 = vadd.f32 %v303, %v347
        %v353 = vadd.f32 %v304, %v350
        %v355 = vsel %vm215, %v319, 0
        %v358 = vsel %vm215, %v320, 0
        %360 = vmatpush.msra.mxu0 0.0
        %361 = vmatpush.msra.mxu0 0.0
        %362 = vmatpush.msra.mxu0 0.0
        %363 = vmatpush.msra.mxu0 0.0
        %364 = vmatpush.msra.mxu0 0.0
        %365 = vmatpush.msra.mxu0 0.0
        %366 = vmatpush.msra.mxu0 0.0
        %367 = vmatpush.msra.mxu0 0.0
        %368 = vmatpush.msra.mxu0 0.0
        %369 = vmatpush.msra.mxu0 0.0
        %370 = vmatpush.msra.mxu0 0.0
        %371 = vmatpush.msra.mxu0 0.0
        %372 = vmatpush.msra.mxu0 0.0
        %373 = vmatpush.msra.mxu0 0.0
        %374 = vmatpush.msra.mxu0 %v310
        %375 = vmatpush.msra.mxu0 %v309
        %376 = vmatmul.f32.gmra.mxu0 %v355
        %v377 = vpop.f32.mrf.mxu0
        %v378 = vadd.f32 0.0, %v377
        %379 = vmatmul.f32.gmra.mxu0 %v358
        %v380 = vpop.f32.mrf.mxu0
        %v381 = vadd.f32 0.0, %v380
        %382 = vdwg.mxu0
        %v383 = vadd.f32 %v352, %v378
        %v384 = vadd.f32 %v353, %v381
        %v386 = vsel %vm215, %v321, 0
        %v389 = vsel %vm215, %v322, 0
        %391 = vmatpush.msra.mxu0 0.0
        %392 = vmatpush.msra.mxu0 0.0
        %393 = vmatpush.msra.mxu0 0.0
        %394 = vmatpush.msra.mxu0 0.0
        %395 = vmatpush.msra.mxu0 0.0
        %396 = vmatpush.msra.mxu0 0.0
        %397 = vmatpush.msra.mxu0 0.0
        %398 = vmatpush.msra.mxu0 0.0
        %399 = vmatpush.msra.mxu0 0.0
        %400 = vmatpush.msra.mxu0 0.0
        %401 = vmatpush.msra.mxu0 0.0
        %402 = vmatpush.msra.mxu0 0.0
        %403 = vmatpush.msra.mxu0 0.0
        %404 = vmatpush.msra.mxu0 0.0
        %405 = vmatpush.msra.mxu0 %v310
        %406 = vmatpush.msra.mxu0 %v309
        %407 = vmatmul.f32.gmra.mxu0 %v386
        %v408 = vpop.f32.mrf.mxu0
        %v409 = vadd.f32 0.0, %v408
        %410 = vmatmul.f32.gmra.mxu0 %v389
        %v411 = vpop.f32.mrf.mxu0
        %v412 = vadd.f32 0.0, %v411
        %413 = vdwg.mxu0
        %v414 = vadd.f32 %v383, %v409
        %v415 = vadd.f32 %v384, %v412
        %s416 = scalar_lea.vmem %s172, 32 [#allocation2]
        %v417 = vld [vmem:[%s416] sm:$0xff]
        %v418 = vld [vmem:[%s416 + $0x8] sm:$0xff]
        %s419 = scalar_lea.vmem [#allocation5], 32
        %v420 = vld [vmem:[%s419] sm:$0xff]
        %v421 = vld [vmem:[%s419 + $0x8] sm:$0xff]
        %v422 = vpack.c.bf16 %v417, %v417
        %v423 = vpack.c.bf16 %v418, %v418
        %v424 = vunpack.c.l.bf16 %v422
        %v425 = vunpack.c.l.bf16 %v423
        %v426 = vsub.f32 %v417, %v424
        %v427 = vsub.f32 %v418, %v425
        %v428 = vpack.c.bf16 %v426, %v426
        %v429 = vpack.c.bf16 %v427, %v427
        %v430 = vunpack.c.l.bf16 %v428
        %v431 = vunpack.c.l.bf16 %v429
        %v432 = vsub.f32 %v426, %v430
        %v433 = vsub.f32 %v427, %v431
        %v435 = vsel %vm215, %v424, 0
        %v438 = vsel %vm215, %v425, 0
        %440 = vmatpush.msra.mxu0 0.0
        %441 = vmatpush.msra.mxu0 0.0
        %442 = vmatpush.msra.mxu0 0.0
        %443 = vmatpush.msra.mxu0 0.0
        %444 = vmatpush.msra.mxu0 0.0
        %445 = vmatpush.msra.mxu0 0.0
        %446 = vmatpush.msra.mxu0 0.0
        %447 = vmatpush.msra.mxu0 0.0
        %448 = vmatpush.msra.mxu0 0.0
        %449 = vmatpush.msra.mxu0 0.0
        %450 = vmatpush.msra.mxu0 0.0
        %451 = vmatpush.msra.mxu0 0.0
        %452 = vmatpush.msra.mxu0 0.0
        %453 = vmatpush.msra.mxu0 0.0
        %454 = vmatpush.msra.mxu0 %v421
        %455 = vmatpush.msra.mxu0 %v420
        %456 = vmatmul.f32.gmra.mxu0 %v435
        %v457 = vpop.f32.mrf.mxu0
        %v458 = vadd.f32 0.0, %v457
        %459 = vmatmul.f32.gmra.mxu0 %v438
        %v460 = vpop.f32.mrf.mxu0
        %v461 = vadd.f32 0.0, %v460
        %462 = vdwg.mxu0
        %v463 = vadd.f32 %v414, %v458
        %v464 = vadd.f32 %v415, %v461
        %v466 = vsel %vm215, %v430, 0
        %v469 = vsel %vm215, %v431, 0
        %471 = vmatpush.msra.mxu0 0.0
        %472 = vmatpush.msra.mxu0 0.0
        %473 = vmatpush.msra.mxu0 0.0
        %474 = vmatpush.msra.mxu0 0.0
        %475 = vmatpush.msra.mxu0 0.0
        %476 = vmatpush.msra.mxu0 0.0
        %477 = vmatpush.msra.mxu0 0.0
        %478 = vmatpush.msra.mxu0 0.0
        %479 = vmatpush.msra.mxu0 0.0
        %480 = vmatpush.msra.mxu0 0.0
        %481 = vmatpush.msra.mxu0 0.0
        %482 = vmatpush.msra.mxu0 0.0
        %483 = vmatpush.msra.mxu0 0.0
        %484 = vmatpush.msra.mxu0 0.0
        %485 = vmatpush.msra.mxu0 %v421
        %486 = vmatpush.msra.mxu0 %v420
        %487 = vmatmul.f32.gmra.mxu0 %v466
        %v488 = vpop.f32.mrf.mxu0
        %v489 = vadd.f32 0.0, %v488
        %490 = vmatmul.f32.gmra.mxu0 %v469
        %v491 = vpop.f32.mrf.mxu0
        %v492 = vadd.f32 0.0, %v491
        %493 = vdwg.mxu0
        %v494 = vadd.f32 %v463, %v489
        %v495 = vadd.f32 %v464, %v492
        %v497 = vsel %vm215, %v432, 0
        %v500 = vsel %vm215, %v433, 0
        %502 = vmatpush.msra.mxu0 0.0
        %503 = vmatpush.msra.mxu0 0.0
        %504 = vmatpush.msra.mxu0 0.0
        %505 = vmatpush.msra.mxu0 0.0
        %506 = vmatpush.msra.mxu0 0.0
        %507 = vmatpush.msra.mxu0 0.0
        %508 = vmatpush.msra.mxu0 0.0
        %509 = vmatpush.msra.mxu0 0.0
        %510 = vmatpush.msra.mxu0 0.0
        %511 = vmatpush.msra.mxu0 0.0
        %512 = vmatpush.msra.mxu0 0.0
        %513 = vmatpush.msra.mxu0 0.0
        %514 = vmatpush.msra.mxu0 0.0
        %515 = vmatpush.msra.mxu0 0.0
        %516 = vmatpush.msra.mxu0 %v421
        %517 = vmatpush.msra.mxu0 %v420
        %518 = vmatmul.f32.gmra.mxu0 %v497
        %v519 = vpop.f32.mrf.mxu0
        %v520 = vadd.f32 0.0, %v519
        %521 = vmatmul.f32.gmra.mxu0 %v500
        %v522 = vpop.f32.mrf.mxu0
        %v523 = vadd.f32 0.0, %v522
        %524 = vdwg.mxu0
        %v525 = vadd.f32 %v494, %v520
        %v526 = vadd.f32 %v495, %v523
        %s527 = scalar_lea.vmem %s172, 48 [#allocation2]
        %v528 = vld [vmem:[%s527] sm:$0xff]
        %v529 = vld [vmem:[%s527 + $0x8] sm:$0xff]
        %s530 = scalar_lea.vmem [#allocation5], 48
        %v531 = vld [vmem:[%s530] sm:$0xff]
        %v532 = vld [vmem:[%s530 + $0x8] sm:$0xff]
        %v533 = vpack.c.bf16 %v528, %v528
        %v534 = vpack.c.bf16 %v529, %v529
        %v535 = vunpack.c.l.bf16 %v533
        %v536 = vunpack.c.l.bf16 %v534
        %v537 = vsub.f32 %v528, %v535
        %v538 = vsub.f32 %v529, %v536
        %v539 = vpack.c.bf16 %v537, %v537
        %v540 = vpack.c.bf16 %v538, %v538
        %v541 = vunpack.c.l.bf16 %v539
        %v542 = vunpack.c.l.bf16 %v540
        %v543 = vsub.f32 %v537, %v541
        %v544 = vsub.f32 %v538, %v542
        %v546 = vsel %vm215, %v535, 0
        %v549 = vsel %vm215, %v536, 0
        %551 = vmatpush.msra.mxu0 0.0
        %552 = vmatpush.msra.mxu0 0.0
        %553 = vmatpush.msra.mxu0 0.0
        %554 = vmatpush.msra.mxu0 0.0
        %555 = vmatpush.msra.mxu0 0.0
        %556 = vmatpush.msra.mxu0 0.0
        %557 = vmatpush.msra.mxu0 0.0
        %558 = vmatpush.msra.mxu0 0.0
        %559 = vmatpush.msra.mxu0 0.0
        %560 = vmatpush.msra.mxu0 0.0
        %561 = vmatpush.msra.mxu0 0.0
        %562 = vmatpush.msra.mxu0 0.0
        %563 = vmatpush.msra.mxu0 0.0
        %564 = vmatpush.msra.mxu0 0.0
        %565 = vmatpush.msra.mxu0 %v532
        %566 = vmatpush.msra.mxu0 %v531
        %567 = vmatmul.f32.gmra.mxu0 %v546
        %v568 = vpop.f32.mrf.mxu0
        %v569 = vadd.f32 0.0, %v568
        %570 = vmatmul.f32.gmra.mxu0 %v549
        %v571 = vpop.f32.mrf.mxu0
        %v572 = vadd.f32 0.0, %v571
        %573 = vdwg.mxu0
        %v574 = vadd.f32 %v525, %v569
        %v575 = vadd.f32 %v526, %v572
        %v577 = vsel %vm215, %v541, 0
        %v580 = vsel %vm215, %v542, 0
        %582 = vmatpush.msra.mxu0 0.0
        %583 = vmatpush.msra.mxu0 0.0
        %584 = vmatpush.msra.mxu0 0.0
        %585 = vmatpush.msra.mxu0 0.0
        %586 = vmatpush.msra.mxu0 0.0
        %587 = vmatpush.msra.mxu0 0.0
        %588 = vmatpush.msra.mxu0 0.0
        %589 = vmatpush.msra.mxu0 0.0
        %590 = vmatpush.msra.mxu0 0.0
        %591 = vmatpush.msra.mxu0 0.0
        %592 = vmatpush.msra.mxu0 0.0
        %593 = vmatpush.msra.mxu0 0.0
        %594 = vmatpush.msra.mxu0 0.0
        %595 = vmatpush.msra.mxu0 0.0
        %596 = vmatpush.msra.mxu0 %v532
        %597 = vmatpush.msra.mxu0 %v531
        %598 = vmatmul.f32.gmra.mxu0 %v577
        %v599 = vpop.f32.mrf.mxu0
        %v600 = vadd.f32 0.0, %v599
        %601 = vmatmul.f32.gmra.mxu0 %v580
        %v602 = vpop.f32.mrf.mxu0
        %v603 = vadd.f32 0.0, %v602
        %604 = vdwg.mxu0
        %v605 = vadd.f32 %v574, %v600
        %v606 = vadd.f32 %v575, %v603
        %v608 = vsel %vm215, %v543, 0
        %v611 = vsel %vm215, %v544, 0
        %613 = vmatpush.msra.mxu0 0.0
        %614 = vmatpush.msra.mxu0 0.0
        %615 = vmatpush.msra.mxu0 0.0
        %616 = vmatpush.msra.mxu0 0.0
        %617 = vmatpush.msra.mxu0 0.0
        %618 = vmatpush.msra.mxu0 0.0
        %619 = vmatpush.msra.mxu0 0.0
        %620 = vmatpush.msra.mxu0 0.0
        %621 = vmatpush.msra.mxu0 0.0
        %622 = vmatpush.msra.mxu0 0.0
        %623 = vmatpush.msra.mxu0 0.0
        %624 = vmatpush.msra.mxu0 0.0
        %625 = vmatpush.msra.mxu0 0.0
        %626 = vmatpush.msra.mxu0 0.0
        %627 = vmatpush.msra.mxu0 %v532
        %628 = vmatpush.msra.mxu0 %v531
        %629 = vmatmul.f32.gmra.mxu0 %v608
        %v630 = vpop.f32.mrf.mxu0
        %v631 = vadd.f32 0.0, %v630
        %632 = vmatmul.f32.gmra.mxu0 %v611
        %v633 = vpop.f32.mrf.mxu0
        %v634 = vadd.f32 0.0, %v633
        %635 = vdwg.mxu0
        %v636 = vadd.f32 %v605, %v631
        %v637 = vadd.f32 %v606, %v634
        %vm638 = vcmask 523264
        %639 = vst.msk [vmem:[%s198] sm:$0xff] %vm638, %v636
        %640 = vst.msk [vmem:[%s198 + $0x8] sm:$0xff] %vm638, %v637
        %s641 = sand.u32 %s91, 1
        %s642 = scalar_lea.sflag [#allocation4], %s641
        %s643 = sand.u32 %s91, 1
        %s644 = smul.addr %s643, 16
        %s645 = scalar_lea.vmem [#allocation7], %s644
        // Predicated region
        $region37: #{tpu_custom_call.1} parent=27 // pred_check
          %p646 = pneg %p101
        $region38: #{tpu_custom_call.1} parent=27 // pred_check_branch
          %648 = sbr.rel (%p646) target = $region40
        $region39: #{tpu_custom_call.1} parent=27 // pred_region
          %650 = vsyncadd %s642, 0
          %s651 = smul.addr %s25, 2
          %s652 = smul.addr %s24, 2
          %s653 = sadd.s32 %s651, %s652
          %s654 = smul.addr %s653, 8
          %s655 = scalar_lea.hbm %s2, %s654
          %s656 = sshll.u32 %s645, 4
          %s657 = int_to_ptr.vmem [resolvable:$true] %s656
          %s658 = sshll.u32 %s655, 4
          %s659 = int_to_ptr.hbm [resolvable:$true] %s658
          %664 = dma.vmem_to_hbm [thread:$0]  %s657, 256, %s659, %s642, 128, 128, 8
        $region40: #{tpu_custom_call.1} parent=27 // pred_fallthru
          _
      $region28: #{tpu_custom_call.1} parent=5 // pred_fallthru
        _
      %p665 = scmp.le.s32.totalorder 2, %s15
      // Predicated region
      $region41: #{tpu_custom_call.1} parent=5 // pred_check
        %p666 = pneg %p665
      $region42: #{tpu_custom_call.1} parent=5 // pred_check_branch
        %668 = sbr.rel (%p666) target = $region44
      $region43: #{tpu_custom_call.1} parent=5 // pred_region
        %s669 = ssub.s32 %s15, 2
        // Predicated region
        $region45: #{tpu_custom_call.1} parent=43 // pred_check
          %p670 = pneg %p107
        $region46: #{tpu_custom_call.1} parent=43 // pred_check_branch
          %672 = sbr.rel (%p670) target = $region48
        $region47: #{tpu_custom_call.1} parent=43 // pred_region
          %s673 = sand.u32 %s92, 1
          %s674 = scalar_lea.sflag [#allocation4], %s673
          %s675 = sand.u32 %s92, 1
          %s676 = smul.addr %s675, 16
          %s677 = scalar_lea.vmem [#allocation7], %s676
          %679 = dma.done %s674, 256
        $region48: #{tpu_custom_call.1} parent=43 // pred_fallthru
          _
      $region44: #{tpu_custom_call.1} parent=5 // pred_fallthru
        _
    $region6: #{tpu_custom_call.1} parent=1 // loop_footer
      %s19 = sadd.s32 1, %s15
    $region7: #{tpu_custom_call.1} parent=1 // loop_footer_branch
      %14 = sbr.rel target = $region3
    $region8: #{tpu_custom_call.1} parent=1 // loop_exit
      _
    %680 = vsyncpa [#allocation3], 1
    %s681 = scalar_lea.sflag [#allocation3], 1
    %682 = vsyncpa %s681, 1
    %683 = vsyncpa [#allocation6], 1
    %684 = vsyncpa [#allocation4], 1
    %s685 = scalar_lea.sflag [#allocation4], 1
    %686 = vsyncpa %s685, 1

</llo_original>
